<compile_context>
chip_gen: v7x
topology: tpu7x:2x2x1
jax: 0.10.0
libtpu: 0.0.40
codegen_flags: <defaults>
</compile_context>

<pallas_src>
import math
import functools

import jax
import jax.numpy as jnp
import numpy as np
from jax.experimental import pallas as pl
from jax.experimental.pallas import tpu as pltpu


# ---------------------------------------------------------------------------
# Generation-aware VMEM budgeting.
# ---------------------------------------------------------------------------
def _vmem_limit_bytes():
    """Pick a scoped-VMEM limit from the actual chip (v7x: 64 MiB physical)."""
    cap = 64 * 1024 * 1024  # conservative default (v7x per-core)
    try:
        info = pltpu.get_tpu_info()
        cap_attr = getattr(info, "vmem_capacity_bytes", None)
        if cap_attr:
            cap = int(cap_attr)
    except Exception:
        pass
    return min((cap * 3) // 4, 100 * 1024 * 1024)


def _choose_tile(hw, bytes_fn, budget, candidates=(1024, 512, 256, 128)):
    """Largest lane-dense HW tile that divides HW and fits the VMEM budget."""
    if hw % 128 != 0:
        return hw  # small / ragged feature map: single full tile
    for t in candidates:
        if hw % t == 0 and bytes_fn(t) <= budget:
            return t
    return 128


def _attn_tile_bytes(tq, tk, C, ch, heads):
    return (2 * tq * 4 + ch * tq * 4 + C * tq * 4          # m/l/acc/proj scratch
            + 2 * ch * tq * 2 + 4 * ch * tk * 2            # q + k/v double-buffers
            + 2 * C * tq * 4 + 2 * C * tq * 4              # residual x + out buffers
            + 2 * heads * ch * C * 2                       # resident proj weight
            + 2 * tk * tq * 4)                             # score / p intermediates


def _choose_attn_tiles(hw, C, ch, heads, budget):
    if hw % 128 != 0:
        return hw, hw
    tk = 256 if hw % 256 == 0 else 128
    for tq in (1024, 512, 256, 128):
        if hw % tq == 0 and _attn_tile_bytes(tq, tk, C, ch, heads) <= budget:
            return tq, tk
    return 128, tk


# ---------------------------------------------------------------------------
# Kernel A: GroupNorm statistics (tiled over HW) -> per-channel (a, b) with
#   x_norm = a * x + b,  a = gamma / sqrt(var + eps),  b = beta - mean * a.
# ---------------------------------------------------------------------------
def _gn_stats_kernel(x_ref, gmat_ref, gamma_ref, beta_ref, ab_ref, stat_sc,
                     *, eps):
    t = pl.program_id(1)
    col = jax.lax.broadcasted_iota(jnp.int32, stat_sc.shape, 1)   # (C, 2)

    @pl.when(t == 0)
    def _():
        stat_sc[...] = jnp.zeros_like(stat_sc)

    x = x_ref[0]                                                  # (C, thw) f32
    s = jnp.sum(x, axis=1, keepdims=True)                         # (C, 1)
    ss = jnp.sum(x * x, axis=1, keepdims=True)                    # (C, 1)
    stat_sc[...] += jnp.where(col == 0, s, ss)                    # fused (C, 2)

    @pl.when(t == pl.num_programs(1) - 1)
    def _():
        # Single same-group averaging matmul for both mean and E[x^2].
        stats = jnp.dot(gmat_ref[...], stat_sc[...],
                        preferred_element_type=jnp.float32)       # (C, 2)
        mean = stats[:, 0:1]
        var = stats[:, 1:2] - mean * mean
        a = jax.lax.rsqrt(var + eps) * gamma_ref[...]
        b = beta_ref[...] - mean * a
        ab_ref[0] = jnp.where(col == 0, a, b)                     # (C, 2)


# ---------------------------------------------------------------------------
# Kernel B: normalize + qkv = Conv2d(C, 3C, 1, bias=False), tiled over HW.
# ---------------------------------------------------------------------------
def _norm_qkv_kernel(x_ref, ab_ref, wqkv_ref, qkv_ref):
    ab = ab_ref[0]                                                # (C, 2)
    xn = x_ref[0] * ab[:, 0:1] + ab[:, 1:2]                       # (C, thw) f32
    qkv_ref[0] = jnp.dot(wqkv_ref[...], xn.astype(jnp.bfloat16),
                         preferred_element_type=jnp.float32
                         ).astype(qkv_ref.dtype)                  # (3C, thw)


# ---------------------------------------------------------------------------
# Kernel C: flash attention (online softmax over KV tiles) + fused per-head
#           projection accumulation + bias + residual.
# ---------------------------------------------------------------------------
def _flash_attn_proj_kernel(q_ref, k_ref, v_ref, wph_ref, bproj_ref, x_ref,
                            o_ref, m_sc, l_sc, acc_sc, proj_sc):
    hd = pl.program_id(2)
    kv = pl.program_id(3)
    n_heads = pl.num_programs(2)
    n_kv = pl.num_programs(3)

    @pl.when(jnp.logical_and(hd == 0, kv == 0))
    def _():
        proj_sc[...] = jnp.zeros_like(proj_sc)

    @pl.when(kv == 0)
    def _():
        m_sc[...] = jnp.full_like(m_sc, -jnp.inf)
        l_sc[...] = jnp.zeros_like(l_sc)
        acc_sc[...] = jnp.zeros_like(acc_sc)

    q = q_ref[0]                                  # (ch, TQ) bf16 (scale folded)
    k = k_ref[0]                                  # (ch, TK) bf16 (scale folded)
    v = v_ref[0]                                  # (ch, TK) bf16

    # Transposed score tile: s[kv, q] = sum_c k[c, kv] * q[c, q]  (f32 acc).
    s = jax.lax.dot_general(k, q, (((0,), (0,)), ((), ())),
                            preferred_element_type=jnp.float32)   # (TK, TQ)

    m_prev = m_sc[...]                                            # (1, TQ)
    m_new = jnp.maximum(m_prev, jnp.max(s, axis=0, keepdims=True))
    alpha = jnp.exp(m_prev - m_new)                               # (1, TQ)
    # TODO(synk): on v6e/v7x the exp / rescale math could run in bf16 (EUP/VPU
    # packing) once validated; kept f32 here for numerical robustness.
    p = jnp.exp(s - m_new)                                        # (TK, TQ) f32
    l_sc[...] = alpha * l_sc[...] + jnp.sum(p, axis=0, keepdims=True)
    pv = jax.lax.dot_general(v, p.astype(v.dtype),
                             (((1,), (0,)), ((), ())),
                             preferred_element_type=jnp.float32)  # (ch, TQ)
    acc_sc[...] = alpha * acc_sc[...] + pv
    m_sc[...] = m_new

    @pl.when(kv == n_kv - 1)
    def _():
        # Finalize this head (exact reciprocal: runs once per head per q tile)
        # and fold it straight into the projection accumulator.
        head_out = acc_sc[...] * pl.reciprocal(l_sc[...], approx=False)  # (ch,TQ)
        proj_sc[...] += jax.lax.dot_general(
            wph_ref[hd], head_out.astype(jnp.bfloat16),
            (((0,), (0,)), ((), ())),
            preferred_element_type=jnp.float32)                          # (C, TQ)

        @pl.when(hd == n_heads - 1)
        def _():
            o_ref[0] = (proj_sc[...] + bproj_ref[...]
                        + x_ref[0]).astype(o_ref.dtype)


# ---------------------------------------------------------------------------
# Wrapper
# ---------------------------------------------------------------------------
def attention_block(x_nchw, gamma, beta, w_qkv, w_proj, b_proj,
                    *, num_heads=1, num_groups=32, eps=1e-5):
    """x_nchw: (B, C, H, W) float32; returns (B, C, H, W) float32."""
    B, C, H, W = x_nchw.shape
    HW = H * W
    assert C % num_groups == 0, "GroupNorm requires C % num_groups == 0"
    assert C % num_heads == 0, "channels must divide evenly across heads"
    ch = C // num_heads
    cg = C // num_groups
    assert ch % 8 == 0, "per-head channels must be a multiple of 8 (sublane)"

    vmem_limit = _vmem_limit_bytes()
    budget = vmem_limit // 2   # conservative per-kernel working-set budget

    x_flat = x_nchw.reshape(B, C, HW).astype(jnp.float32)

    # ---- host-side (one-time) parameter preparation -------------------------
    # Same-group averaging matrix for GroupNorm statistics.
    gid = np.arange(C) // cg
    gmat = jnp.asarray((gid[:, None] == gid[None, :]).astype(np.float32)
                       / float(cg * HW))

    # Fold the 1/d^0.25 attention scale into q and k rows of the qkv weight.
    # The module computes qkv then reshape(B*heads, 3*ch, HW).chunk(3) -> the
    # channel layout is head-major blocks [q_h | k_h | v_h] of size ch each.
    scale = 1.0 / math.sqrt(math.sqrt(ch))
    row_scale = np.ones((3 * C, 1), np.float32)
    for hd in range(num_heads):
        base = hd * 3 * ch
        row_scale[base:base + 2 * ch] = scale
    w_qkv_scaled = (w_qkv.astype(jnp.float32) * jnp.asarray(row_scale)
                    ).astype(jnp.bfloat16)

    # Per-head transposed projection weight: wph[h, j, o] = w_proj[o, h*ch + j].
    w_proj_heads = (w_proj.astype(jnp.float32)
                    .reshape(C, num_heads, ch)
                    .transpose(1, 2, 0)
                    .astype(jnp.bfloat16))                        # (heads, ch, C)

    gamma2 = gamma.reshape(C, 1).astype(jnp.float32)
    beta2 = beta.reshape(C, 1).astype(jnp.float32)
    bproj2 = b_proj.reshape(C, 1).astype(jnp.float32)

    # ---- kernel A: GroupNorm stats (grid over batch x HW tiles) -------------
    t_stat = _choose_tile(HW, lambda t: 2 * C * t * 4 + C * C * 4 + 64 * C,
                          budget)
    n_stat = HW // t_stat

    ab = pl.pallas_call(
        functools.partial(_gn_stats_kernel, eps=eps),
        out_shape=jax.ShapeDtypeStruct((B, C, 2), jnp.float32),
        grid_spec=pltpu.PrefetchScalarGridSpec(
            num_scalar_prefetch=0,
            grid=(B, n_stat),
            in_specs=[
                pl.BlockSpec((1, C, t_stat), lambda b, t: (b, 0, t)),   # x tile
                pl.BlockSpec((C, C), lambda b, t: (0, 0)),              # group matrix
                pl.BlockSpec((C, 1), lambda b, t: (0, 0)),              # gamma
                pl.BlockSpec((C, 1), lambda b, t: (0, 0)),              # beta
            ],
            out_specs=pl.BlockSpec((1, C, 2), lambda b, t: (b, 0, 0)),
            scratch_shapes=[pltpu.VMEM((C, 2), jnp.float32)],
        ),
        compiler_params=pltpu.CompilerParams(
            dimension_semantics=("parallel", "arbitrary"),
            vmem_limit_bytes=vmem_limit),
    )(x_flat, gmat, gamma2, beta2)

    # ---- kernel B: normalize + qkv conv (grid over batch x HW tiles) --------
    t_qkv = _choose_tile(
        HW, lambda t: 2 * C * t * 4 + 2 * 3 * C * t * 2 + 3 * C * C * 2 + 64 * C,
        budget)
    n_qkv = HW // t_qkv

    qkv = pl.pallas_call(
        _norm_qkv_kernel,
        out_shape=jax.ShapeDtypeStruct((B, 3 * C, HW), jnp.bfloat16),
        grid_spec=pltpu.PrefetchScalarGridSpec(
            num_scalar_prefetch=0,
            grid=(B, n_qkv),
            in_specs=[
                pl.BlockSpec((1, C, t_qkv), lambda b, t: (b, 0, t)),    # x tile
                pl.BlockSpec((1, C, 2), lambda b, t: (b, 0, 0)),        # (a, b)
                pl.BlockSpec((3 * C, C), lambda b, t: (0, 0)),          # qkv weight
            ],
            out_specs=pl.BlockSpec((1, 3 * C, t_qkv), lambda b, t: (b, 0, t)),
        ),
        compiler_params=pltpu.CompilerParams(
            dimension_semantics=("parallel", "parallel"),
            vmem_limit_bytes=vmem_limit),
    )(x_flat, ab, w_qkv_scaled)

    # ---- kernel C: flash attention + fused proj + bias + residual ----------
    tq, tk = _choose_attn_tiles(HW, C, ch, num_heads, budget)
    nq, nk = HW // tq, HW // tk

    out = pl.pallas_call(
        _flash_attn_proj_kernel,
        out_shape=jax.ShapeDtypeStruct((B, C, HW), jnp.float32),
        grid_spec=pltpu.PrefetchScalarGridSpec(
            num_scalar_prefetch=0,
            grid=(B, nq, num_heads, nk),
            in_specs=[
                # q / k / v head-slices of the head-interleaved (B, 3C, HW) qkv
                pl.BlockSpec((1, ch, tq), lambda b, qi, h, ki: (b, h * 3, qi)),
                pl.BlockSpec((1, ch, tk), lambda b, qi, h, ki: (b, h * 3 + 1, ki)),
                pl.BlockSpec((1, ch, tk), lambda b, qi, h, ki: (b, h * 3 + 2, ki)),
                # projection weight: VMEM-resident (constant index), sliced by hd
                pl.BlockSpec((num_heads, ch, C), lambda b, qi, h, ki: (0, 0, 0)),
                pl.BlockSpec((C, 1), lambda b, qi, h, ki: (0, 0)),            # bias
                pl.BlockSpec((1, C, tq), lambda b, qi, h, ki: (b, 0, qi)),    # residual
            ],
            out_specs=pl.BlockSpec((1, C, tq), lambda b, qi, h, ki: (b, 0, qi)),
            scratch_shapes=[
                pltpu.VMEM((1, tq), jnp.float32),    # running max  m
                pltpu.VMEM((1, tq), jnp.float32),    # running sum  l
                pltpu.VMEM((ch, tq), jnp.float32),   # per-head attention acc
                pltpu.VMEM((C, tq), jnp.float32),    # projection accumulator
            ],
        ),
        compiler_params=pltpu.CompilerParams(
            dimension_semantics=("parallel", "parallel", "arbitrary", "arbitrary"),
            vmem_limit_bytes=vmem_limit),
    )(qkv, qkv, qkv, w_proj_heads, bproj2, x_flat)

    return out.reshape(B, C, H, W)


# ---------------------------------------------------------------------------
# Pure-JAX replica of the PyTorch forward (validation).
# ---------------------------------------------------------------------------
def reference_forward(x, gamma, beta, w_qkv, w_proj, b_proj,
                      *, num_heads, num_groups, eps):
    B, C, H, W = x.shape
    HW = H * W
    xr = x.reshape(B, num_groups, C // num_groups, HW)
    mean = xr.mean(axis=(2, 3), keepdims=True)
    var = ((xr - mean) ** 2).mean(axis=(2, 3), keepdims=True)
    xn = (xr - mean) / jnp.sqrt(var + eps)
    xn = xn.reshape(B, C, HW) * gamma.reshape(1, C, 1) + beta.reshape(1, C, 1)

    qkv = jnp.einsum('oc,bcs->bos', w_qkv, xn)                 # (B, 3C, HW)
    qkv = qkv.reshape(B * num_heads, -1, HW)
    q, k, v = jnp.split(qkv, 3, axis=1)
    scale = 1.0 / math.sqrt(math.sqrt(C // num_heads))
    attn = jnp.einsum('bct,bcs->bts', q * scale, k * scale)
    attn = jax.nn.softmax(attn, axis=-1)
    h = jnp.einsum('bts,bcs->bct', attn, v)
    h = h.reshape(B, C, HW)
    h = jnp.einsum('oc,bcs->bos', w_proj, h) + b_proj.reshape(1, C, 1)
    return (h + x.reshape(B, C, HW)).reshape(B, C, H, W)


if __name__ == "__main__":
    # Small shapes consistent with the module: GroupNorm(32, C) needs C % 32 == 0.
    B, C, H, W = 2, 64, 8, 8
    NUM_HEADS = 2
    NUM_GROUPS = 32
    EPS = 1e-5

    key = jax.random.PRNGKey(0)
    kx, kg, kb, kq, kp, kpb = jax.random.split(key, 6)

    x = jax.random.normal(kx, (B, C, H, W), dtype=jnp.float32)

    # Deterministic synthetic parameters (shapes from the module's __init__).
    gamma = 1.0 + 0.05 * jax.random.normal(kg, (C,), dtype=jnp.float32)   # GroupNorm weight
    beta = 0.05 * jax.random.normal(kb, (C,), dtype=jnp.float32)          # GroupNorm bias
    w_qkv = 0.1 * jax.random.normal(kq, (3 * C, C), dtype=jnp.float32)    # Conv2d(C, 3C, 1, bias=False)
    w_proj = 0.1 * jax.random.normal(kp, (C, C), dtype=jnp.float32)       # Conv2d(C, C, 1)
    b_proj = 0.05 * jax.random.normal(kpb, (C,), dtype=jnp.float32)

    out = attention_block(x, gamma, beta, w_qkv, w_proj, b_proj,
                          num_heads=NUM_HEADS, num_groups=NUM_GROUPS, eps=EPS)
    out = jax.block_until_ready(out)

    ref = reference_forward(x, gamma, beta, w_qkv, w_proj, b_proj,
                            num_heads=NUM_HEADS, num_groups=NUM_GROUPS, eps=EPS)
    ref = jax.block_until_ready(ref)

    # bf16 MXU operands -> loosened tolerance.
    np.testing.assert_allclose(np.asarray(out), np.asarray(ref),
                               rtol=3e-2, atol=3e-2)
    print("KERNEL_OK")
</pallas_src>

<mosaic_0001>
module attributes {stable_mosaic.version = 11 : i64} {
  func.func @_gn_stats_kernel(%arg0: i32, %arg1: i32, %arg2: memref<1x64x64xf32, #tpu.memory_space<vmem>>, %arg3: memref<64x64xf32, #tpu.memory_space<vmem>>, %arg4: memref<64x1xf32, #tpu.memory_space<vmem>>, %arg5: memref<64x1xf32, #tpu.memory_space<vmem>>, %arg6: memref<1x64x2xf32, #tpu.memory_space<vmem>>, %arg7: memref<64x2xf32, #tpu.memory_space<vmem>>) attributes {dimension_semantics = [#tpu.dimension_semantics<parallel>, #tpu.dimension_semantics<arbitrary>], iteration_bounds = array<i64: 2, 1>, scalar_prefetch = 0 : i64, scratch_operands = 1 : i64, tpu.core_type = #tpu.core_type<tc>, window_params = [{transform_indices = @transform_0, window_bounds = array<i64: 1, 64, 64>}, {pipeline_mode = #tpu.pipeline_mode<synchronous>, transform_indices = @transform_1, window_bounds = array<i64: 64, 64>}, {pipeline_mode = #tpu.pipeline_mode<synchronous>, transform_indices = @transform_2, window_bounds = array<i64: 64, 1>}, {pipeline_mode = #tpu.pipeline_mode<synchronous>, transform_indices = @transform_3, window_bounds = array<i64: 64, 1>}, {transform_indices = @transform_4, window_bounds = array<i64: 1, 64, 2>}]} {
    %0 = tpu.iota {dimensions = array<i32: 1>} : vector<64x2xi32>
    %c0_i32 = arith.constant 0 : i32
    %1 = arith.cmpi eq, %arg1, %c0_i32 : i32
    %2 = arith.extui %1 : i1 to i32
    %c0_i32_0 = arith.constant 0 : i32
    %3 = arith.cmpi ne, %2, %c0_i32_0 : i32
    scf.if %3 {
      %cst_11 = arith.constant 0.000000e+00 : f32
      %24 = vector.broadcast %cst_11 : f32 to vector<64x2xf32>
      %c0_12 = arith.constant 0 : index
      %c0_13 = arith.constant 0 : index
      %25 = vector.load %arg7[%c0_12, %c0_13] : memref<64x2xf32, #tpu.memory_space<vmem>>, vector<64x2xf32>
      tpu.vector_store %arg7[%c0_12, %c0_13], %24 {strides = array<i32>} : memref<64x2xf32, #tpu.memory_space<vmem>>, vector<64x2xf32>,
    } else {
    }
    %c0 = arith.constant 0 : index
    %c0_1 = arith.constant 0 : index
    %c0_2 = arith.constant 0 : index
    %4 = vector.load %arg2[%c0, %c0_1, %c0_2] : memref<1x64x64xf32, #tpu.memory_space<vmem>>, vector<1x64x64xf32>
    %5 = vector.shape_cast %4 : vector<1x64x64xf32> to vector<64x64xf32>
    %cst = arith.constant dense<0.000000e+00> : vector<64xf32>
    %6 = vector.multi_reduction <add>, %5, %cst [1] : vector<64x64xf32> to vector<64xf32>
    %7 = vector.shape_cast %6 : vector<64xf32> to vector<64x1xf32>
    %8 = arith.mulf %5, %5 : vector<64x64xf32>
    %cst_3 = arith.constant dense<0.000000e+00> : vector<64xf32>
    %9 = vector.multi_reduction <add>, %8, %cst_3 [1] : vector<64x64xf32> to vector<64xf32>
    %10 = vector.shape_cast %9 : vector<64xf32> to vector<64x1xf32>
    %c0_4 = arith.constant 0 : index
    %c0_5 = arith.constant 0 : index
    %11 = vector.load %arg7[%c0_4, %c0_5] : memref<64x2xf32, #tpu.memory_space<vmem>>, vector<64x2xf32>
    %c0_i32_6 = arith.constant 0 : i32
    %12 = vector.broadcast %c0_i32_6 : i32 to vector<64x2xi32>
    %13 = arith.cmpi eq, %0, %12 : vector<64x2xi32>
    %14 = vector.shape_cast %7 : vector<64x1xf32> to vector<64x1xf32>
    %15 = vector.broadcast %14 : vector<64x1xf32> to vector<64x2xf32>
    %16 = vector.shape_cast %10 : vector<64x1xf32> to vector<64x1xf32>
    %17 = vector.broadcast %16 : vector<64x1xf32> to vector<64x2xf32>
    %18 = arith.select %13, %15, %17 : vector<64x2xi1>, vector<64x2xf32>
    %19 = arith.addf %11, %18 : vector<64x2xf32>
    %c0_7 = arith.constant 0 : index
    %c0_8 = arith.constant 0 : index
    %20 = vector.load %arg7[%c0_7, %c0_8] : memref<64x2xf32, #tpu.memory_space<vmem>>, vector<64x2xf32>
    tpu.vector_store %arg7[%c0_7, %c0_8], %19 {strides = array<i32>} : memref<64x2xf32, #tpu.memory_space<vmem>>, vector<64x2xf32>,
    %c0_i32_9 = arith.constant 0 : i32
    %21 = arith.cmpi eq, %arg1, %c0_i32_9 : i32
    %22 = arith.extui %21 : i1 to i32
    %c0_i32_10 = arith.constant 0 : i32
    %23 = arith.cmpi ne, %22, %c0_i32_10 : i32
    scf.if %23 {
      %c0_11 = arith.constant 0 : index
      %c0_12 = arith.constant 0 : index
      %24 = vector.load %arg3[%c0_11, %c0_12] : memref<64x64xf32, #tpu.memory_space<vmem>>, vector<64x64xf32>
      %c0_13 = arith.constant 0 : index
      %c0_14 = arith.constant 0 : index
      %25 = vector.load %arg7[%c0_13, %c0_14] : memref<64x2xf32, #tpu.memory_space<vmem>>, vector<64x2xf32>
      %cst_15 = arith.constant dense<0.000000e+00> : vector<64x2xf32>
      %26 = tpu.matmul %24, %25, %cst_15 {dimension_numbers = #tpu.dot_dimension_numbers<[1], [0], [0], [1], [0, 0, 1, 1], [], []>} : vector<64x64xf32>, vector<64x2xf32>, vector<64x2xf32> -> vector<64x2xf32>
      %27 = vector.extract_strided_slice %26 {offsets = [0, 0], sizes = [64, 1], strides = [1, 1]} : vector<64x2xf32> to vector<64x1xf32>
      %28 = vector.extract_strided_slice %26 {offsets = [0, 1], sizes = [64, 1], strides = [1, 1]} : vector<64x2xf32> to vector<64x1xf32>
      %29 = arith.mulf %27, %27 : vector<64x1xf32>
      %30 = arith.subf %28, %29 : vector<64x1xf32>
      %cst_16 = arith.constant 9.99999974E-6 : f32
      %31 = vector.broadcast %cst_16 : f32 to vector<64x1xf32>
      %32 = arith.addf %30, %31 : vector<64x1xf32>
      %33 = math.rsqrt %32 : vector<64x1xf32>
      %c0_17 = arith.constant 0 : index
      %c0_18 = arith.constant 0 : index
      %34 = vector.load %arg4[%c0_17, %c0_18] : memref<64x1xf32, #tpu.memory_space<vmem>>, vector<64x1xf32>
      %35 = arith.mulf %33, %34 : vector<64x1xf32>
      %c0_19 = arith.constant 0 : index
      %c0_20 = arith.constant 0 : index
      %36 = vector.load %arg5[%c0_19, %c0_20] : memref<64x1xf32, #tpu.memory_space<vmem>>, vector<64x1xf32>
      %37 = arith.mulf %27, %35 : vector<64x1xf32>
      %38 = arith.subf %36, %37 : vector<64x1xf32>
      %c0_i32_21 = arith.constant 0 : i32
      %39 = vector.broadcast %c0_i32_21 : i32 to vector<64x2xi32>
      %40 = arith.cmpi eq, %0, %39 : vector<64x2xi32>
      %41 = vector.shape_cast %35 : vector<64x1xf32> to vector<64x1xf32>
      %42 = vector.broadcast %41 : vector<64x1xf32> to vector<64x2xf32>
      %43 = vector.shape_cast %38 : vector<64x1xf32> to vector<64x1xf32>
      %44 = vector.broadcast %43 : vector<64x1xf32> to vector<64x2xf32>
      %45 = arith.select %40, %42, %44 : vector<64x2xi1>, vector<64x2xf32>
      %c0_22 = arith.constant 0 : index
      %c0_23 = arith.constant 0 : index
      %c0_24 = arith.constant 0 : index
      %46 = vector.load %arg6[%c0_22, %c0_23, %c0_24] : memref<1x64x2xf32, #tpu.memory_space<vmem>>, vector<1x64x2xf32>
      %47 = vector.shape_cast %46 : vector<1x64x2xf32> to vector<64x2xf32>
      %48 = vector.shape_cast %45 : vector<64x2xf32> to vector<1x64x2xf32>
      tpu.vector_store %arg6[%c0_22, %c0_23, %c0_24], %48 {strides = array<i32>} : memref<1x64x2xf32, #tpu.memory_space<vmem>>, vector<1x64x2xf32>,
    } else {
    }
    return
  }
  func.func @transform_0(%arg0: i32, %arg1: i32) -> (i32, i32, i32) {
    %c0_i32 = arith.constant 0 : i32
    %c0_i32_0 = arith.constant 0 : i32
    return %arg0, %c0_i32, %arg1 : i32, i32, i32
  }
  func.func @transform_1(%arg0: i32, %arg1: i32) -> (i32, i32) {
    %c0_i32 = arith.constant 0 : i32
    %c0_i32_0 = arith.constant 0 : i32
    %c0_i32_1 = arith.constant 0 : i32
    return %c0_i32, %c0_i32_0 : i32, i32
  }
  func.func @transform_2(%arg0: i32, %arg1: i32) -> (i32, i32) {
    %c0_i32 = arith.constant 0 : i32
    %c0_i32_0 = arith.constant 0 : i32
    %c0_i32_1 = arith.constant 0 : i32
    return %c0_i32, %c0_i32_0 : i32, i32
  }
  func.func @transform_3(%arg0: i32, %arg1: i32) -> (i32, i32) {
    %c0_i32 = arith.constant 0 : i32
    %c0_i32_0 = arith.constant 0 : i32
    %c0_i32_1 = arith.constant 0 : i32
    return %c0_i32, %c0_i32_0 : i32, i32
  }
  func.func @transform_4(%arg0: i32, %arg1: i32) -> (i32, i32, i32) {
    %c0_i32 = arith.constant 0 : i32
    %c0_i32_0 = arith.constant 0 : i32
    %c0_i32_1 = arith.constant 0 : i32
    return %arg0, %c0_i32, %c0_i32_0 : i32, i32, i32
  }
}

</mosaic_0001>

<llo_original>
// kernel: tpu_custom_call.1
$region0: #{tpu_custom_call.1}
  #allocation0 [shape = 'u32[]', space=smem, size = 0x4, offset = 0x4, fixed_abs, tag = 'smem constant byte address 0x4 - core index']
  #allocation1 [shape = 'u32[144,128]{1,0:T(1,128)}', space=vmem, size = 0x12000, scoped, tag = 'internal scratch']
  #allocation2 [shape = 'f32[64,2]{1,0:T(8,128)}', space=vmem, size = 0x8000, scoped, tag = 'scratch operand']
  %s0 = inlined_call_operand.vmem [shape: f32[2,64,64], index: 0, kind: input, shape index: {}]
  %s1 = inlined_call_operand.hbm [shape: f32[64,64], index: 1, kind: input, shape index: {}]
  %s2 = inlined_call_operand.vmem [shape: f32[64,1], index: 2, kind: input, shape index: {}]
  %s3 = inlined_call_operand.vmem [shape: f32[64,1], index: 3, kind: input, shape index: {}]
  %s4 = inlined_call_operand.vmem [shape: f32[2,64,2], index: 4, kind: output, shape index: {}]
  %s5 = sld [smem:[#allocation0]]
  $region61: #{tpu_custom_call.1} parent=0
    _
  %s7 = ssub.s32 1, %s5
  %s8 = scalar_select 0, %s7, %s5
  $region1: #{tpu_custom_call.1} parent=0
    #allocation3 [shape = 'u8[32768]{0}', space=vmem, size = 0x8000, scoped, tag = 'input window, operand 1, single buffered']
    #allocation4 [shape = 's32[2]{0}', space=sflag, size = 0x8, scoped, tag = 'scoped memory for tpu_custom_call.1']
    %9 = vsyncpa [#allocation4], 0
    loop: start=0, step=1, limit=4
    $region2: #{tpu_custom_call.1} parent=1 // loop_pre_header
      _
    $region3: #{tpu_custom_call.1} parent=1 // loop_header
      %s11 = sphi 0, %s15
      %p12 = scmp.ge.s32.totalorder %s11, 4
      %s18 = sphi 0, %s30
      %s19 = sphi 0, %s26
      %s20 = sphi 0, %s18
      %s21 = sphi 0, %s19
      %s22 = sphi 0, %s20
      %s23 = sphi 0, %s21
      %s35 = sphi 0, %s37
      %s38 = sphi 0, %s35
      %s39 = sphi 0, %s38
      %s55 = sphi 0, %s39
      %s59 = sphi 0, %s59
      %s61 = sphi 0, %s59
      %s62 = sphi 0, %s61
      %s76 = sphi 0, %s62
      %s80 = sphi 0, %s80
      %s82 = sphi 0, %s80
      %s83 = sphi 0, %s82
      %s97 = sphi 0, %s83
      %s101 = sphi 0, %s101
      %s103 = sphi 0, %s101
      %s104 = sphi 0, %s103
      %s118 = sphi 0, %s104
      %s124 = sphi 0, %s126
      %s127 = sphi 0, %s124
      %s128 = sphi 0, %s127
      %s144 = sphi 0, %s128
    $region4: #{tpu_custom_call.1} parent=1 // loop_header_branch
      %14 = sbr.rel (%p12) target = $region8
    $region5: #{tpu_custom_call.1} parent=1 // loop_body
      %s16 = ssub.s32 %s11, 1
      %s17 = ssub.s32 %s11, 2
      %s24 = sadd.s32 1, %s19
      %p25 = scmp.ge.s32.totalorder %s24, 1
      %s26 = scalar_select %p25, 0, %s24
      %s27 = sadd.s32 1, %s18
      %s28 = scalar_select %p25, %s27, %s18
      %p29 = scmp.ge.s32.totalorder %s28, 2
      %s30 = scalar_select %p29, 0, %s28
      %s31 = ssub.s32 %s18, %s30
      %s32 = ssub.s32 %s19, %s26
      %s33 = sor.u32 %s31, %s32
      %p34 = scmp.eq.s32.totalorder %s33, 0
      %s36 = sadd.s32 %s35, 1
      %s37 = scalar_select %p34, %s35, %s36
      %p40 = pneg %p34
      %p41 = scmp.eq.s32.totalorder %s11, 1
      %p42 = por %p40, %p41
      %p43 = scmp.ne.s32.totalorder %s35, %s38
      %p44 = scmp.eq.s32.totalorder %s11, 0
      %p45 = por %p43, %p44
      %p46 = scmp.ne.s32.totalorder %s35, %s38
      %p47 = scmp.eq.s32.totalorder %s16, 1
      %p48 = por %p46, %p47
      %p49 = scmp.ne.s32.totalorder %s38, %s39
      %p50 = scmp.eq.s32.totalorder %s16, 0
      %p51 = por %p49, %p50
      %p52 = scmp.ne.s32.totalorder %s38, %s39
      %p53 = scmp.eq.s32.totalorder %s17, 1
      %p54 = por %p52, %p53
      %p56 = scmp.ne.s32.totalorder %s39, %s55
      %p57 = scmp.eq.s32.totalorder %s17, 0
      %p58 = por %p56, %p57
      %s60 = sadd.s32 %s59, 1
      %p63 = scmp.eq.s32.totalorder %s11, 1
      %p64 = scmp.ne.s32.totalorder %s59, %s61
      %p65 = scmp.eq.s32.totalorder %s11, 0
      %p66 = por %p64, %p65
      %p67 = scmp.ne.s32.totalorder %s59, %s61
      %p68 = scmp.eq.s32.totalorder %s16, 1
      %p69 = por %p67, %p68
      %p70 = scmp.ne.s32.totalorder %s61, %s62
      %p71 = scmp.eq.s32.totalorder %s16, 0
      %p72 = por %p70, %p71
      %p73 = scmp.ne.s32.totalorder %s61, %s62
      %p74 = scmp.eq.s32.totalorder %s17, 1
      %p75 = por %p73, %p74
      %p77 = scmp.ne.s32.totalorder %s62, %s76
      %p78 = scmp.eq.s32.totalorder %s17, 0
      %p79 = por %p77, %p78
      %s81 = sadd.s32 %s80, 1
      %p84 = scmp.eq.s32.totalorder %s11, 1
      %p85 = scmp.ne.s32.totalorder %s80, %s82
      %p86 = scmp.eq.s32.totalorder %s11, 0
      %p87 = por %p85, %p86
      %p88 = scmp.ne.s32.totalorder %s80, %s82
      %p89 = scmp.eq.s32.totalorder %s16, 1
      %p90 = por %p88, %p89
      %p91 = scmp.ne.s32.totalorder %s82, %s83
      %p92 = scmp.eq.s32.totalorder %s16, 0
      %p93 = por %p91, %p92
      %p94 = scmp.ne.s32.totalorder %s82, %s83
      %p95 = scmp.eq.s32.totalorder %s17, 1
      %p96 = por %p94, %p95
      %p98 = scmp.ne.s32.totalorder %s83, %s97
      %p99 = scmp.eq.s32.totalorder %s17, 0
      %p100 = por %p98, %p99
      %s102 = sadd.s32 %s101, 1
      %p105 = scmp.eq.s32.totalorder %s11, 1
      %p106 = scmp.ne.s32.totalorder %s101, %s103
      %p107 = scmp.eq.s32.totalorder %s11, 0
      %p108 = por %p106, %p107
      %p109 = scmp.ne.s32.totalorder %s101, %s103
      %p110 = scmp.eq.s32.totalorder %s16, 1
      %p111 = por %p109, %p110
      %p112 = scmp.ne.s32.totalorder %s103, %s104
      %p113 = scmp.eq.s32.totalorder %s16, 0
      %p114 = por %p112, %p113
      %p115 = scmp.ne.s32.totalorder %s103, %s104
      %p116 = scmp.eq.s32.totalorder %s17, 1
      %p117 = por %p115, %p116
      %p119 = scmp.ne.s32.totalorder %s104, %s118
      %p120 = scmp.eq.s32.totalorder %s17, 0
      %p121 = por %p119, %p120
      %s122 = ssub.s32 %s18, %s30
      %p123 = scmp.eq.s32.totalorder %s122, 0
      %s125 = sadd.s32 %s124, 1
      %s126 = scalar_select %p123, %s124, %s125
      %p129 = pneg %p123
      %p130 = scmp.eq.s32.totalorder %s11, 1
      %p131 = por %p129, %p130
      %p132 = scmp.ne.s32.totalorder %s124, %s127
      %p133 = scmp.eq.s32.totalorder %s11, 0
      %p134 = por %p132, %p133
      %p135 = scmp.ne.s32.totalorder %s124, %s127
      %p136 = scmp.eq.s32.totalorder %s16, 1
      %p137 = por %p135, %p136
      %p138 = scmp.ne.s32.totalorder %s127, %s128
      %p139 = scmp.eq.s32.totalorder %s16, 0
      %p140 = por %p138, %p139
      %p141 = scmp.ne.s32.totalorder %s127, %s128
      %p142 = scmp.eq.s32.totalorder %s17, 1
      %p143 = por %p141, %p142
      %p145 = scmp.ne.s32.totalorder %s128, %s144
      %p146 = scmp.eq.s32.totalorder %s17, 0
      %p147 = por %p145, %p146
      %p148 = scmp.le.s32.totalorder 1, %s11
      %p149 = scmp.lt.s32.totalorder %s11, 3
      %p150 = pnand %p148, %p149
      %p151 = pneg %p150
      // Predicated region
      $region9: #{tpu_custom_call.1} parent=5 // pred_check
        _
      $region10: #{tpu_custom_call.1} parent=5 // pred_check_branch
        %153 = sbr.rel (%p150) target = $region12
      $region11: #{tpu_custom_call.1} parent=5 // pred_region
        %s154 = ssub.s32 %s11, 1
        // Predicated region
        $region13: #{tpu_custom_call.1} parent=11 // pred_check
          %p155 = pneg %p72
        $region14: #{tpu_custom_call.1} parent=11 // pred_check_branch
          %157 = sbr.rel (%p155) target = $region16
        $region15: #{tpu_custom_call.1} parent=11 // pred_region
          %s159 = ssub.s32 1024, 1024
          %160 = vsyncadd [#allocation4], %s159
          %s161 = sshll.u32 [#allocation3], 4
          %s162 = int_to_ptr.vmem [resolvable:$true] %s161
          %167 = dma.hbm_to_vmem [thread:$0]  %s1, 1024, %s162, [#allocation4], 128, 128, 8
        $region16: #{tpu_custom_call.1} parent=11 // pred_fallthru
          _
        // Predicated region
        $region17: #{tpu_custom_call.1} parent=11 // pred_check
          %p168 = pneg %p93
        $region18: #{tpu_custom_call.1} parent=11 // pred_check_branch
          %170 = sbr.rel (%p168) target = $region20
        $region19: #{tpu_custom_call.1} parent=11 // pred_region
          _
        $region20: #{tpu_custom_call.1} parent=11 // pred_fallthru
          _
        // Predicated region
        $region21: #{tpu_custom_call.1} parent=11 // pred_check
          %p171 = pneg %p114
        $region22: #{tpu_custom_call.1} parent=11 // pred_check_branch
          %173 = sbr.rel (%p171) target = $region24
        $region23: #{tpu_custom_call.1} parent=11 // pred_region
          _
        $region24: #{tpu_custom_call.1} parent=11 // pred_fallthru
          _
      $region12: #{tpu_custom_call.1} parent=5 // pred_fallthru
        _
      %p174 = scmp.lt.s32.totalorder %s11, 2
      // Predicated region
      $region25: #{tpu_custom_call.1} parent=5 // pred_check
        %p175 = pneg %p174
      $region26: #{tpu_custom_call.1} parent=5 // pred_check_branch
        %177 = sbr.rel (%p175) target = $region28
      $region27: #{tpu_custom_call.1} parent=5 // pred_region
        // Predicated region
        $region29: #{tpu_custom_call.1} parent=27 // pred_check
          %p178 = pneg %p45
        $region30: #{tpu_custom_call.1} parent=27 // pred_check_branch
          %180 = sbr.rel (%p178) target = $region32
        $region31: #{tpu_custom_call.1} parent=27 // pred_region
          %p181 = scmp.lt.s32.totalorder %s18, 1
          %s182 = scalar_select %p181, %s18, 1
          %p183 = scmp.lt.s32.totalorder %s19, 0
          %s184 = scalar_select %p183, %s19, 0
          %s185 = smul.addr %s182, 8
          %s186 = sadd.s32 %s184, %s185
          %s187 = smul.addr %s186, 8
          %s188 = scalar_lea.vmem %s0, %s187
        $region32: #{tpu_custom_call.1} parent=27 // pred_fallthru
          _
      $region28: #{tpu_custom_call.1} parent=5 // pred_fallthru
        _
      %p189 = scmp.le.s32.totalorder 1, %s11
      %p190 = scmp.lt.s32.totalorder %s11, 3
      %p191 = pnand %p189, %p190
      %p192 = pneg %p191
      // Predicated region
      $region33: #{tpu_custom_call.1} parent=5 // pred_check
        _
      $region34: #{tpu_custom_call.1} parent=5 // pred_check_branch
        %194 = sbr.rel (%p191) target = $region36
      $region35: #{tpu_custom_call.1} parent=5 // pred_region
        %s195 = ssub.s32 %s11, 1
        // Predicated region
        $region37: #{tpu_custom_call.1} parent=35 // pred_check
          %p196 = pneg %p72
        $region38: #{tpu_custom_call.1} parent=35 // pred_check_branch
          %198 = sbr.rel (%p196) target = $region40
        $region39: #{tpu_custom_call.1} parent=35 // pred_region
          %199 = dma.done [#allocation4], 1024
        $region40: #{tpu_custom_call.1} parent=35 // pred_fallthru
          _
        %p200 = scmp.lt.s32.totalorder %s20, 1
        %s201 = scalar_select %p200, %s20, 1
        %p202 = scmp.lt.s32.totalorder %s21, 0
        %s203 = scalar_select %p202, %s21, 0
        %s204 = smul.addr %s201, 8
        %s205 = sadd.s32 %s203, %s204
        %s206 = smul.addr %s205, 8
        %s207 = scalar_lea.vmem %s0, %s206
        %p208 = pneg %p51
        %p209 = pneg %p48
        %p210 = pneg %p72
        %p211 = pneg %p69
        %p212 = pneg %p93
        %p213 = pneg %p90
        %p214 = pneg %p114
        %p215 = pneg %p111
        %p216 = pneg %p140
        %p217 = pneg %p137
        %p218 = scmp.lt.s32.totalorder %s20, 1
        %s219 = scalar_select %p218, %s20, 1
        %s220 = smul.addr %s219, 8
        %s221 = smul.addr %s220, 8
        %s222 = scalar_lea.vmem %s4, %s221
        %p223 = scmp.lt.s32.totalorder %s20, 1
        %s224 = scalar_select %p223, %s20, 1
        %p225 = scmp.lt.s32.totalorder %s21, 0
        %s226 = scalar_select %p225, %s21, 0
        %s227 = smul.addr %s224, 8
        %s228 = sadd.s32 %s226, %s227
        %s229 = smul.addr %s228, 8
        %s230 = scalar_lea.vmem %s0, %s229
        %p231 = scmp.lt.s32.totalorder %s20, 1
        %s232 = scalar_select %p231, %s20, 1
        %s233 = smul.addr %s232, 8
        %s234 = smul.addr %s233, 8
        %s235 = scalar_lea.vmem %s4, %s234
        %v236 = vlaneseq
        %v237 = vand.u32 %v236, 127
        %p238 = scmp.eq.s32.totalorder %s21, 0
        // Predicated region
        $region41: #{tpu_custom_call.1} parent=35 // pred_check
          %p239 = pneg %p238
        $region42: #{tpu_custom_call.1} parent=35 // pred_check_branch
          %241 = sbr.rel (%p239) target = $region44
        $region43: #{tpu_custom_call.1} parent=35 // pred_region
          %vm242 = vcmask 15360
          %243 = vst.msk [vmem:[#allocation2] sm:$0xff] %vm242, 0.0
          %244 = vst.msk [vmem:[#allocation2 + $0x8] sm:$0xff] %vm242, 0.0
          %245 = vst.msk [vmem:[#allocation2 + $0x10] sm:$0xff] %vm242, 0.0
          %246 = vst.msk [vmem:[#allocation2 + $0x18] sm:$0xff] %vm242, 0.0
          %247 = vst.msk [vmem:[#allocation2 + $0x20] sm:$0xff] %vm242, 0.0
          %248 = vst.msk [vmem:[#allocation2 + $0x28] sm:$0xff] %vm242, 0.0
          %249 = vst.msk [vmem:[#allocation2 + $0x30] sm:$0xff] %vm242, 0.0
          %250 = vst.msk [vmem:[#allocation2 + $0x38] sm:$0xff] %vm242, 0.0
        $region44: #{tpu_custom_call.1} parent=35 // pred_fallthru
          _
        %v251 = vld [vmem:[%s230] sm:$0xff]
        %v252 = vld [vmem:[%s230 + $0x8] sm:$0xff]
        %v253 = vld [vmem:[%s230 + $0x10] sm:$0xff]
        %v254 = vld [vmem:[%s230 + $0x18] sm:$0xff]
        %v255 = vld [vmem:[%s230 + $0x20] sm:$0xff]
        %v256 = vld [vmem:[%s230 + $0x28] sm:$0xff]
        %v257 = vld [vmem:[%s230 + $0x30] sm:$0xff]
        %v258 = vld [vmem:[%s230 + $0x38] sm:$0xff]
        %vm259 = vcmask 523264
        %v260 = vsel %vm259, %v251, 0.0
        %261 = vadd.xlane.f32.xlu0 %v260
        %v262 = vpop.xlane.xlu0 %261
        %v263 = vsel %vm259, %v252, 0.0
        %264 = vadd.xlane.f32.xlu0 %v263
        %v265 = vpop.xlane.xlu0 %264
        %v266 = vsel %vm259, %v253, 0.0
        %267 = vadd.xlane.f32.xlu0 %v266
        %v268 = vpop.xlane.xlu0 %267
        %v269 = vsel %vm259, %v254, 0.0
        %270 = vadd.xlane.f32.xlu0 %v269
        %v271 = vpop.xlane.xlu0 %270
        %v272 = vsel %vm259, %v255, 0.0
        %273 = vadd.xlane.f32.xlu0 %v272
        %v274 = vpop.xlane.xlu0 %273
        %v275 = vsel %vm259, %v256, 0.0
        %276 = vadd.xlane.f32.xlu0 %v275
        %v277 = vpop.xlane.xlu0 %276
        %v278 = vsel %vm259, %v257, 0.0
        %279 = vadd.xlane.f32.xlu0 %v278
        %v280 = vpop.xlane.xlu0 %279
        %v281 = vsel %vm259, %v258, 0.0
        %282 = vadd.xlane.f32.xlu0 %v281
        %v283 = vpop.xlane.xlu0 %282
        %v284 = vmul.f32 %v251, %v251
        %v285 = vmul.f32 %v252, %v252
        %v286 = vmul.f32 %v253, %v253
        %v287 = vmul.f32 %v254, %v254
        %v288 = vmul.f32 %v255, %v255
        %v289 = vmul.f32 %v256, %v256
        %v290 = vmul.f32 %v257, %v257
        %v291 = vmul.f32 %v258, %v258
        %v292 = vsel %vm259, %v284, 0.0
        %293 = vadd.xlane.f32.xlu0 %v292
        %v294 = vpop.xlane.xlu0 %293
        %v295 = vsel %vm259, %v285, 0.0
        %296 = vadd.xlane.f32.xlu0 %v295
        %v297 = vpop.xlane.xlu0 %296
        %v298 = vsel %vm259, %v286, 0.0
        %299 = vadd.xlane.f32.xlu0 %v298
        %v300 = vpop.xlane.xlu0 %299
        %v301 = vsel %vm259, %v287, 0.0
        %302 = vadd.xlane.f32.xlu0 %v301
        %v303 = vpop.xlane.xlu0 %302
        %v304 = vsel %vm259, %v288, 0.0
        %305 = vadd.xlane.f32.xlu0 %v304
        %v306 = vpop.xlane.xlu0 %305
        %v307 = vsel %vm259, %v289, 0.0
        %308 = vadd.xlane.f32.xlu0 %v307
        %v309 = vpop.xlane.xlu0 %308
        %v310 = vsel %vm259, %v290, 0.0
        %311 = vadd.xlane.f32.xlu0 %v310
        %v312 = vpop.xlane.xlu0 %311
        %v313 = vsel %vm259, %v291, 0.0
        %314 = vadd.xlane.f32.xlu0 %v313
        %v315 = vpop.xlane.xlu0 %314
        %v316 = vld [vmem:[#allocation2] sm:$0xff]
        %v317 = vld [vmem:[#allocation2 + $0x8] sm:$0xff]
        %v318 = vld [vmem:[#allocation2 + $0x10] sm:$0xff]
        %v319 = vld [vmem:[#allocation2 + $0x18] sm:$0xff]
        %v320 = vld [vmem:[#allocation2 + $0x20] sm:$0xff]
        %v321 = vld [vmem:[#allocation2 + $0x28] sm:$0xff]
        %v322 = vld [vmem:[#allocation2 + $0x30] sm:$0xff]
        %v323 = vld [vmem:[#allocation2 + $0x38] sm:$0xff]
        %vm324 = vcmp.eq.s32.totalorder %v237, 0
        %v325 = vsel %vm324, %v262, %v294
        %v326 = vsel %vm324, %v265, %v297
        %v327 = vsel %vm324, %v268, %v300
        %v328 = vsel %vm324, %v271, %v303
        %v329 = vsel %vm324, %v274, %v306
        %v330 = vsel %vm324, %v277, %v309
        %v331 = vsel %vm324, %v280, %v312
        %v332 = vsel %vm324, %v283, %v315
        %v333 = vadd.f32 %v316, %v325
        %v334 = vadd.f32 %v317, %v326
        %v335 = vadd.f32 %v318, %v327
        %v336 = vadd.f32 %v319, %v328
        %v337 = vadd.f32 %v320, %v329
        %v338 = vadd.f32 %v321, %v330
        %v339 = vadd.f32 %v322, %v331
        %v340 = vadd.f32 %v323, %v332
        %vm341 = vcmask 15360
        %342 = vst.msk [vmem:[#allocation2] sm:$0xff] %vm341, %v333
        %343 = vst.msk [vmem:[#allocation2 + $0x8] sm:$0xff] %vm341, %v334
        %344 = vst.msk [vmem:[#allocation2 + $0x10] sm:$0xff] %vm341, %v335
        %345 = vst.msk [vmem:[#allocation2 + $0x18] sm:$0xff] %vm341, %v336
        %346 = vst.msk [vmem:[#allocation2 + $0x20] sm:$0xff] %vm341, %v337
        %347 = vst.msk [vmem:[#allocation2 + $0x28] sm:$0xff] %vm341, %v338
        %348 = vst.msk [vmem:[#allocation2 + $0x30] sm:$0xff] %vm341, %v339
        %349 = vst.msk [vmem:[#allocation2 + $0x38] sm:$0xff] %vm341, %v340
        // Predicated region
        $region45: #{tpu_custom_call.1} parent=35 // pred_check
          %p350 = pneg %p238
        $region46: #{tpu_custom_call.1} parent=35 // pred_check_branch
          %352 = sbr.rel (%p350) target = $region48
        $region47: #{tpu_custom_call.1} parent=35 // pred_region
          %v353 = vld [vmem:[#allocation3] sm:$0xff]
          %v354 = vld [vmem:[#allocation3 + $0x8] sm:$0xff]
          %v355 = vld [vmem:[#allocation3 + $0x10] sm:$0xff]
          %v356 = vld [vmem:[#allocation3 + $0x18] sm:$0xff]
          %v357 = vld [vmem:[#allocation3 + $0x20] sm:$0xff]
          %v358 = vld [vmem:[#allocation3 + $0x28] sm:$0xff]
          %v359 = vld [vmem:[#allocation3 + $0x30] sm:$0xff]
          %v360 = vld [vmem:[#allocation3 + $0x38] sm:$0xff]
          %v361 = vld [vmem:[#allocation2] sm:$0xff]
          %v362 = vld [vmem:[#allocation2 + $0x8] sm:$0xff]
          %v363 = vld [vmem:[#allocation2 + $0x10] sm:$0xff]
          %v364 = vld [vmem:[#allocation2 + $0x18] sm:$0xff]
          %v365 = vld [vmem:[#allocation2 + $0x20] sm:$0xff]
          %v366 = vld [vmem:[#allocation2 + $0x28] sm:$0xff]
          %v367 = vld [vmem:[#allocation2 + $0x30] sm:$0xff]
          %v368 = vld [vmem:[#allocation2 + $0x38] sm:$0xff]
          %v370 = vsel %vm259, %v353, 0
          %v373 = vsel %vm259, %v354, 0
          %v376 = vsel %vm259, %v355, 0
          %v379 = vsel %vm259, %v356, 0
          %v382 = vsel %vm259, %v357, 0
          %v385 = vsel %vm259, %v358, 0
          %v388 = vsel %vm259, %v359, 0
          %v391 = vsel %vm259, %v360, 0
          %393 = vmatprep.subr.mxu0 0.0
          %394 = vmatpush1.msra.mxu0 %v361
          %395 = vmatprep.subr.mxu0 0.0
          %396 = vmatpush1.msra.mxu0 %v362
          %397 = vmatprep.subr.mxu0 0.0
          %398 = vmatpush1.msra.mxu0 %v363
          %399 = vmatprep.subr.mxu0 0.0
          %400 = vmatpush1.msra.mxu0 %v364
          %401 = vmatprep.subr.mxu0 0.0
          %402 = vmatpush1.msra.mxu0 %v365
          %403 = vmatprep.subr.mxu0 0.0
          %404 = vmatpush1.msra.mxu0 %v366
          %405 = vmatprep.subr.mxu0 0.0
          %406 = vmatpush1.msra.mxu0 %v367
          %407 = vmatprep.subr.mxu0 0.0
          %408 = vmatpush1.msra.mxu0 %v368
          %409 = vmatprep.subr.mxu0 0.0
          %410 = vmatpush1.msra.mxu0 0.0
          %411 = vmatprep.subr.mxu0 0.0
          %412 = vmatpush1.msra.mxu0 0.0
          %413 = vmatprep.subr.mxu0 0.0
          %414 = vmatpush1.msra.mxu0 0.0
          %415 = vmatprep.subr.mxu0 0.0
          %416 = vmatpush1.msra.mxu0 0.0
          %417 = vmatprep.subr.mxu0 0.0
          %418 = vmatpush1.msra.mxu0 0.0
          %419 = vmatprep.subr.mxu0 0.0
          %420 = vmatpush1.msra.mxu0 0.0
          %421 = vmatprep.subr.mxu0 0.0
          %422 = vmatpush1.msra.mxu0 0.0
          %423 = vmatprep.subr.mxu0 0.0
          %424 = vmatpush1.msra.mxu0 0.0
          %425 = vmatprep.subr.mxu0 0.0
          %426 = vmatpush1.msra.mxu0 0.0
          %427 = vmatprep.subr.mxu0 0.0
          %428 = vmatpush1.msra.mxu0 0.0
          %429 = vmatprep.subr.mxu0 0.0
          %430 = vmatpush1.msra.mxu0 0.0
          %431 = vmatprep.subr.mxu0 0.0
          %432 = vmatpush1.msra.mxu0 0.0
          %433 = vmatprep.subr.mxu0 0.0
          %434 = vmatpush1.msra.mxu0 0.0
          %435 = vmatprep.subr.mxu0 0.0
          %436 = vmatpush1.msra.mxu0 0.0
          %437 = vmatprep.subr.mxu0 0.0
          %438 = vmatpush1.msra.mxu0 0.0
          %439 = vmatprep.subr.mxu0 0.0
          %440 = vmatpush1.msra.mxu0 0.0
          %441 = vmatprep.subr.mxu0 0.0
          %442 = vmatpush1.msra.mxu0 0.0
          %443 = vmatprep.subr.mxu0 0.0
          %444 = vmatpush1.msra.mxu0 0.0
          %445 = vmatprep.subr.mxu0 0.0
          %446 = vmatpush1.msra.mxu0 0.0
          %447 = vmatprep.subr.mxu0 0.0
          %448 = vmatpush1.msra.mxu0 0.0
          %449 = vmatprep.subr.mxu0 0.0
          %450 = vmatpush1.msra.mxu0 0.0
          %451 = vmatprep.subr.mxu0 0.0
          %452 = vmatpush1.msra.mxu0 0.0
          %453 = vmatprep.subr.mxu0 0.0
          %454 = vmatpush1.msra.mxu0 0.0
          %455 = vmatprep.subr.mxu0 0.0
          %456 = vmatpush1.msra.mxu0 0.0
          %457 = vmatprep.mubr.f32.mxu0 0.0
          %458 = vmatmul.mubr.f32.gmra.mrb[0].mxu0 %v370
          %v459 = vpop.f32.mrb[0].mxu0
          %v460 = vadd.f32 0.0, %v459
          %v461 = vpop.f32.mrb[0].mxu0
          %462 = vmatprep.mubr.f32.mxu0 0.0
          %463 = vmatmul.mubr.f32.gmra.mrb[0].mxu0 %v373
          %v464 = vpop.f32.mrb[0].mxu0
          %v465 = vadd.f32 0.0, %v464
          %v466 = vpop.f32.mrb[0].mxu0
          %467 = vmatprep.mubr.f32.mxu0 0.0
          %468 = vmatmul.mubr.f32.gmra.mrb[0].mxu0 %v376
          %v469 = vpop.f32.mrb[0].mxu0
          %v470 = vadd.f32 0.0, %v469
          %v471 = vpop.f32.mrb[0].mxu0
          %472 = vmatprep.mubr.f32.mxu0 0.0
          %473 = vmatmul.mubr.f32.gmra.mrb[0].mxu0 %v379
          %v474 = vpop.f32.mrb[0].mxu0
          %v475 = vadd.f32 0.0, %v474
          %v476 = vpop.f32.mrb[0].mxu0
          %477 = vmatprep.mubr.f32.mxu0 0.0
          %478 = vmatmul.mubr.f32.gmra.mrb[0].mxu0 %v382
          %v479 = vpop.f32.mrb[0].mxu0
          %v480 = vadd.f32 0.0, %v479
          %v481 = vpop.f32.mrb[0].mxu0
          %482 = vmatprep.mubr.f32.mxu0 0.0
          %483 = vmatmul.mubr.f32.gmra.mrb[0].mxu0 %v385
          %v484 = vpop.f32.mrb[0].mxu0
          %v485 = vadd.f32 0.0, %v484
          %v486 = vpop.f32.mrb[0].mxu0
          %487 = vmatprep.mubr.f32.mxu0 0.0
          %488 = vmatmul.mubr.f32.gmra.mrb[0].mxu0 %v388
          %v489 = vpop.f32.mrb[0].mxu0
          %v490 = vadd.f32 0.0, %v489
          %v491 = vpop.f32.mrb[0].mxu0
          %492 = vmatprep.mubr.f32.mxu0 0.0
          %493 = vmatmul.mubr.f32.gmra.mrb[0].mxu0 %v391
          %v494 = vpop.f32.mrb[0].mxu0
          %v495 = vadd.f32 0.0, %v494
          %v496 = vpop.f32.mrb[0].mxu0
          %497 = vdwg.mxu0
          %v498 = vmul.f32 %v460, %v460
          %v499 = vmul.f32 %v465, %v465
          %v500 = vmul.f32 %v470, %v470
          %v501 = vmul.f32 %v475, %v475
          %v502 = vmul.f32 %v480, %v480
          %v503 = vmul.f32 %v485, %v485
          %v504 = vmul.f32 %v490, %v490
          %v505 = vmul.f32 %v495, %v495
          %514 = vrot.lane.b32.xlu0 %v498, 1
          %v515 = vpop.permute.xlu0 %514
          %516 = vrot.lane.b32.xlu0 %v499, 1
          %v517 = vpop.permute.xlu0 %516
          %518 = vrot.lane.b32.xlu0 %v500, 1
          %v519 = vpop.permute.xlu0 %518
          %520 = vrot.lane.b32.xlu0 %v501, 1
          %v521 = vpop.permute.xlu0 %520
          %522 = vrot.lane.b32.xlu0 %v502, 1
          %v523 = vpop.permute.xlu0 %522
          %524 = vrot.lane.b32.xlu0 %v503, 1
          %v525 = vpop.permute.xlu0 %524
          %526 = vrot.lane.b32.xlu0 %v504, 1
          %v527 = vpop.permute.xlu0 %526
          %528 = vrot.lane.b32.xlu0 %v505, 1
          %v529 = vpop.permute.xlu0 %528
          %v538 = vsub.f32 %v460, %v515
          %v539 = vsub.f32 %v465, %v517
          %v540 = vsub.f32 %v470, %v519
          %v541 = vsub.f32 %v475, %v521
          %v542 = vsub.f32 %v480, %v523
          %v543 = vsub.f32 %v485, %v525
          %v544 = vsub.f32 %v490, %v527
          %v545 = vsub.f32 %v495, %v529
          %v546 = vadd.f32 %v538, 1e-05
          %v547 = vadd.f32 %v539, 1e-05
          %v548 = vadd.f32 %v540, 1e-05
          %v549 = vadd.f32 %v541, 1e-05
          %v550 = vadd.f32 %v542, 1e-05
          %v551 = vadd.f32 %v543, 1e-05
          %v552 = vadd.f32 %v544, 1e-05
          %v553 = vadd.f32 %v545, 1e-05
          %v554 = vrsqrt.pop %v546
          %v555 = vrsqrt.pop %v547
          %v556 = vrsqrt.pop %v548
          %v557 = vrsqrt.pop %v549
          %v558 = vrsqrt.pop %v550
          %v559 = vrsqrt.pop %v551
          %v560 = vrsqrt.pop %v552
          %v561 = vrsqrt.pop %v553
          %v562 = vld [vmem:[%s2] sm:$0xff]
          %v563 = vld [vmem:[%s2 + $0x8] sm:$0xff]
          %v564 = vld [vmem:[%s2 + $0x10] sm:$0xff]
          %v565 = vld [vmem:[%s2 + $0x18] sm:$0xff]
          %v566 = vld [vmem:[%s2 + $0x20] sm:$0xff]
          %v567 = vld [vmem:[%s2 + $0x28] sm:$0xff]
          %v568 = vld [vmem:[%s2 + $0x30] sm:$0xff]
          %v569 = vld [vmem:[%s2 + $0x38] sm:$0xff]
          %578 = vrot.lane.b32.xlu0 %v562, 1
          %v579 = vpop.permute.xlu0 %578
          %580 = vrot.lane.b32.xlu0 %v563, 1
          %v581 = vpop.permute.xlu0 %580
          %582 = vrot.lane.b32.xlu0 %v564, 1
          %v583 = vpop.permute.xlu0 %582
          %584 = vrot.lane.b32.xlu0 %v565, 1
          %v585 = vpop.permute.xlu0 %584
          %586 = vrot.lane.b32.xlu0 %v566, 1
          %v587 = vpop.permute.xlu0 %586
          %588 = vrot.lane.b32.xlu0 %v567, 1
          %v589 = vpop.permute.xlu0 %588
          %590 = vrot.lane.b32.xlu0 %v568, 1
          %v591 = vpop.permute.xlu0 %590
          %592 = vrot.lane.b32.xlu0 %v569, 1
          %v593 = vpop.permute.xlu0 %592
          %v602 = vmul.f32 %v554, %v579
          %v603 = vmul.f32 %v555, %v581
          %v604 = vmul.f32 %v556, %v583
          %v605 = vmul.f32 %v557, %v585
          %v606 = vmul.f32 %v558, %v587
          %v607 = vmul.f32 %v559, %v589
          %v608 = vmul.f32 %v560, %v591
          %v609 = vmul.f32 %v561, %v593
          %v610 = vld [vmem:[%s3] sm:$0xff]
          %v611 = vld [vmem:[%s3 + $0x8] sm:$0xff]
          %v612 = vld [vmem:[%s3 + $0x10] sm:$0xff]
          %v613 = vld [vmem:[%s3 + $0x18] sm:$0xff]
          %v614 = vld [vmem:[%s3 + $0x20] sm:$0xff]
          %v615 = vld [vmem:[%s3 + $0x28] sm:$0xff]
          %v616 = vld [vmem:[%s3 + $0x30] sm:$0xff]
          %v617 = vld [vmem:[%s3 + $0x38] sm:$0xff]
          %626 = vrot.lane.b32.xlu0 %v602, 127
          %v627 = vpop.permute.xlu0 %626
          %628 = vrot.lane.b32.xlu0 %v603, 127
          %v629 = vpop.permute.xlu0 %628
          %630 = vrot.lane.b32.xlu0 %v604, 127
          %v631 = vpop.permute.xlu0 %630
          %632 = vrot.lane.b32.xlu0 %v605, 127
          %v633 = vpop.permute.xlu0 %632
          %634 = vrot.lane.b32.xlu0 %v606, 127
          %v635 = vpop.permute.xlu0 %634
          %636 = vrot.lane.b32.xlu0 %v607, 127
          %v637 = vpop.permute.xlu0 %636
          %638 = vrot.lane.b32.xlu0 %v608, 127
          %v639 = vpop.permute.xlu0 %638
          %640 = vrot.lane.b32.xlu0 %v609, 127
          %v641 = vpop.permute.xlu0 %640
          %v650 = vmul.f32 %v460, %v627
          %v651 = vmul.f32 %v465, %v629
          %v652 = vmul.f32 %v470, %v631
          %v653 = vmul.f32 %v475, %v633
          %v654 = vmul.f32 %v480, %v635
          %v655 = vmul.f32 %v485, %v637
          %v656 = vmul.f32 %v490, %v639
          %v657 = vmul.f32 %v495, %v641
          %v658 = vsub.f32 %v610, %v650
          %v659 = vsub.f32 %v611, %v651
          %v660 = vsub.f32 %v612, %v652
          %v661 = vsub.f32 %v613, %v653
          %v662 = vsub.f32 %v614, %v654
          %v663 = vsub.f32 %v615, %v655
          %v664 = vsub.f32 %v616, %v656
          %v665 = vsub.f32 %v617, %v657
          %666 = vset.pattern.permute.xlu0 1
          %667 = vperm.xlu0 %666, %v602
          %v668 = vpop.permute.xlu0 %667
          %670 = vset.pattern.permute.xlu0 1
          %671 = vperm.xlu0 %670, %v603
          %v672 = vpop.permute.xlu0 %671
          %674 = vset.pattern.permute.xlu0 1
          %675 = vperm.xlu0 %674, %v604
          %v676 = vpop.permute.xlu0 %675
          %678 = vset.pattern.permute.xlu0 1
          %679 = vperm.xlu0 %678, %v605
          %v680 = vpop.permute.xlu0 %679
          %682 = vset.pattern.permute.xlu0 1
          %683 = vperm.xlu0 %682, %v606
          %v684 = vpop.permute.xlu0 %683
          %686 = vset.pattern.permute.xlu0 1
          %687 = vperm.xlu0 %686, %v607
          %v688 = vpop.permute.xlu0 %687
          %690 = vset.pattern.permute.xlu0 1
          %691 = vperm.xlu0 %690, %v608
          %v692 = vpop.permute.xlu0 %691
          %694 = vset.pattern.permute.xlu0 1
          %695 = vperm.xlu0 %694, %v609
          %v696 = vpop.permute.xlu0 %695
          %699 = vset.pattern.permute.xlu0 0
          %700 = vperm.xlu0 %699, %v658
          %v701 = vpop.permute.xlu0 %700
          %704 = vset.pattern.permute.xlu0 0
          %705 = vperm.xlu0 %704, %v659
          %v706 = vpop.permute.xlu0 %705
          %709 = vset.pattern.permute.xlu0 0
          %710 = vperm.xlu0 %709, %v660
          %v711 = vpop.permute.xlu0 %710
          %714 = vset.pattern.permute.xlu0 0
          %715 = vperm.xlu0 %714, %v661
          %v716 = vpop.permute.xlu0 %715
          %719 = vset.pattern.permute.xlu0 0
          %720 = vperm.xlu0 %719, %v662
          %v721 = vpop.permute.xlu0 %720
          %724 = vset.pattern.permute.xlu0 0
          %725 = vperm.xlu0 %724, %v663
          %v726 = vpop.permute.xlu0 %725
          %729 = vset.pattern.permute.xlu0 0
          %730 = vperm.xlu0 %729, %v664
          %v731 = vpop.permute.xlu0 %730
          %734 = vset.pattern.permute.xlu0 0
          %735 = vperm.xlu0 %734, %v665
          %v736 = vpop.permute.xlu0 %735
          %v738 = vsel %vm324, %v668, %v701
          %v739 = vsel %vm324, %v672, %v706
          %v740 = vsel %vm324, %v676, %v711
          %v741 = vsel %vm324, %v680, %v716
          %v742 = vsel %vm324, %v684, %v721
          %v743 = vsel %vm324, %v688, %v726
          %v744 = vsel %vm324, %v692, %v731
          %v745 = vsel %vm324, %v696, %v736
          %746 = vst.msk [vmem:[%s235] sm:$0xff] %vm341, %v738
          %747 = vst.msk [vmem:[%s235 + $0x8] sm:$0xff] %vm341, %v739
          %748 = vst.msk [vmem:[%s235 + $0x10] sm:$0xff] %vm341, %v740
          %749 = vst.msk [vmem:[%s235 + $0x18] sm:$0xff] %vm341, %v741
          %750 = vst.msk [vmem:[%s235 + $0x20] sm:$0xff] %vm341, %v742
          %751 = vst.msk [vmem:[%s235 + $0x28] sm:$0xff] %vm341, %v743
          %752 = vst.msk [vmem:[%s235 + $0x30] sm:$0xff] %vm341, %v744
          %753 = vst.msk [vmem:[%s235 + $0x38] sm:$0xff] %vm341, %v745
        $region48: #{tpu_custom_call.1} parent=35 // pred_fallthru
          _
        %p754 = scmp.lt.s32.totalorder %s20, 1
        %s755 = scalar_select %p754, %s20, 1
        %s756 = smul.addr %s755, 8
        %s757 = smul.addr %s756, 8
        %s758 = scalar_lea.vmem %s4, %s757
        // Predicated region
        $region49: #{tpu_custom_call.1} parent=35 // pred_check
          %p759 = pneg %p137
        $region50: #{tpu_custom_call.1} parent=35 // pred_check_branch
          %761 = sbr.rel (%p759) target = $region52
        $region51: #{tpu_custom_call.1} parent=35 // pred_region
          _
        $region52: #{tpu_custom_call.1} parent=35 // pred_fallthru
          _
      $region36: #{tpu_custom_call.1} parent=5 // pred_fallthru
        _
      %p762 = scmp.le.s32.totalorder 2, %s11
      // Predicated region
      $region53: #{tpu_custom_call.1} parent=5 // pred_check
        %p763 = pneg %p762
      $region54: #{tpu_custom_call.1} parent=5 // pred_check_branch
        %765 = sbr.rel (%p763) target = $region56
      $region55: #{tpu_custom_call.1} parent=5 // pred_region
        %s766 = ssub.s32 %s11, 2
        // Predicated region
        $region57: #{tpu_custom_call.1} parent=55 // pred_check
          %p767 = pneg %p143
        $region58: #{tpu_custom_call.1} parent=55 // pred_check_branch
          %769 = sbr.rel (%p767) target = $region60
        $region59: #{tpu_custom_call.1} parent=55 // pred_region
          %p770 = scmp.lt.s32.totalorder %s22, 1
          %s771 = scalar_select %p770, %s22, 1
          %s772 = smul.addr %s771, 8
          %s773 = smul.addr %s772, 8
          %s774 = scalar_lea.vmem %s4, %s773
        $region60: #{tpu_custom_call.1} parent=55 // pred_fallthru
          _
      $region56: #{tpu_custom_call.1} parent=5 // pred_fallthru
        _
    $region6: #{tpu_custom_call.1} parent=1 // loop_footer
      %s15 = sadd.s32 1, %s11
    $region7: #{tpu_custom_call.1} parent=1 // loop_footer_branch
      %10 = sbr.rel target = $region3
    $region8: #{tpu_custom_call.1} parent=1 // loop_exit
      _
    %775 = vsyncpa [#allocation4], 1
    %s776 = scalar_lea.sflag [#allocation4], 1
    %777 = vsyncpa %s776, 1

</llo_original>
